<compile_context>
chip_gen: v7x
topology: tpu7x:2x2x1
jax: 0.10.0
libtpu: 0.0.40
codegen_flags: <defaults>
</compile_context>

<pallas_src>
import functools

import jax
import jax.numpy as jnp
from jax.experimental import pallas as pl
from jax.experimental.pallas import tpu as pltpu


def _instance_counter_kernel(x_ref, w_ref, b_ref, o_ref, acc_ref, *,
                             hw_total, hw_tile, mask_needed):
    # x_ref:   (b_tile, C_in, hw_tile)  native dtype
    # w_ref:   (1, C_in)  f32  fused  (Wlin @ Wconv) / (H*W)
    # b_ref:   (1, 1)     f32  fused  Wlin @ bconv + blin
    # o_ref:   (b_tile, 1) f32
    # acc_ref: (b_tile, C_in) f32 scratch (per-channel spatial sums)
    hw_idx = pl.program_id(1)
    last = pl.num_programs(1) - 1

    @pl.when(hw_idx == 0)
    def _init():
        acc_ref[...] = jnp.zeros_like(acc_ref)

    x = x_ref[...].astype(jnp.float32)                        # (b_tile, C, hw_tile)

    if mask_needed:
        # Only the ragged last tile needs masking; keep all other steps mask-free.
        @pl.when(hw_idx == last)
        def _masked_sum():
            lane = jax.lax.broadcasted_iota(jnp.int32, x.shape, dimension=2)
            valid = (hw_idx * hw_tile + lane) < hw_total
            acc_ref[...] += jnp.sum(jnp.where(valid, x, 0.0), axis=-1)

        @pl.when(hw_idx != last)
        def _plain_sum():
            acc_ref[...] += jnp.sum(x, axis=-1)
    else:
        acc_ref[...] += jnp.sum(x, axis=-1)                   # (b_tile, C)

    @pl.when(hw_idx == last)
    def _finalize():
        # Fused head: logit_b = sum_c acc[b, c] * w_fused[c] + b_fused ; sigmoid.
        logit = jnp.sum(acc_ref[...] * w_ref[...], axis=-1, keepdims=True) + b_ref[...]
        o_ref[...] = jax.nn.sigmoid(logit).astype(o_ref.dtype)


def _pick_tiles(B, C, HW, itemsize, hw_tile_target, x_bytes_budget):
    """Pick (b_tile, hw_tile) so the double-buffered x tile fits the budget and
    BlockSpec constraints hold (b_tile == B or multiple of 8 output rows;
    hw_tile == HW or a multiple of 128)."""
    hw_full = HW <= hw_tile_target
    hw_tile = HW if hw_full else max(128, (hw_tile_target // 128) * 128)

    # Batch-tile candidates: divisors of B that are B itself or multiples of 8
    # (keeps the (b_tile, 1) output block legal).
    cands = [d for d in range(1, B + 1) if B % d == 0 and (d == B or d % 8 == 0)]
    b_tile = cands[0]
    for d in sorted(cands):
        if 2 * d * C * hw_tile * itemsize <= x_bytes_budget:
            b_tile = d

    # If even the smallest legal b_tile blows the budget, shrink the spatial tile.
    while (not hw_full) and 2 * b_tile * C * hw_tile * itemsize > x_bytes_budget \
            and hw_tile > 128:
        hw_tile -= 128
    return b_tile, hw_tile


def instance_counter_forward(x_nchw, wconv, bconv, wlin, blin, *,
                             hw_tile_target=8192,
                             x_bytes_budget=8 * 1024 * 1024):
    """x_nchw: (B, C_in, H, W); params from nn.Conv2d(C_in, OUT, 1) and
    nn.Linear(OUT, 1).  Returns (B, 1) sigmoid-activated score."""
    B, C, H, W = x_nchw.shape
    HW = H * W
    OUT = wconv.shape[0]

    x = x_nchw.reshape(B, C, HW)                                   # native dtype

    # Fuse conv weight, conv bias, 1/(H*W) mean scale, linear weight & bias
    # (everything up to the sigmoid is linear):
    #   logit = mean_hw(x) @ Wc^T @ Wl^T + (bc @ Wl^T + bl)
    wconv2 = wconv.reshape(OUT, C).astype(jnp.float32)             # (OUT, C)
    wlin_row = wlin.reshape(1, OUT).astype(jnp.float32)            # (1, OUT)
    w_fused = (wlin_row @ wconv2) * (1.0 / HW)                     # (1, C)
    b_fused = (wlin_row @ bconv.reshape(OUT, 1).astype(jnp.float32)
               + blin.reshape(1, 1).astype(jnp.float32))           # (1, 1)

    b_tile, hw_tile = _pick_tiles(B, C, HW, x.dtype.itemsize,
                                  hw_tile_target, x_bytes_budget)
    n_b = B // b_tile
    n_hw = pl.cdiv(HW, hw_tile)
    mask_needed = (HW % hw_tile) != 0

    kernel = functools.partial(_instance_counter_kernel,
                               hw_total=HW, hw_tile=hw_tile,
                               mask_needed=mask_needed)

    x_tile_bytes = b_tile * C * hw_tile * x.dtype.itemsize
    vmem_limit = int(min(64 << 20, max(16 << 20, 4 * x_tile_bytes + (2 << 20))))

    return pl.pallas_call(
        kernel,
        out_shape=jax.ShapeDtypeStruct((B, 1), jnp.float32),
        grid=(n_b, n_hw),
        in_specs=[
            # Streamed input tiles (auto double-buffered).
            pl.BlockSpec((b_tile, C, hw_tile), lambda b, h: (b, 0, h)),
            # Tiny fused params: constant index maps -> fetched once, VMEM-resident.
            pl.BlockSpec((1, C), lambda b, h: (0, 0)),
            pl.BlockSpec((1, 1), lambda b, h: (0, 0)),
        ],
        out_specs=pl.BlockSpec((b_tile, 1), lambda b, h: (b, 0)),
        scratch_shapes=[pltpu.VMEM((b_tile, C), jnp.float32)],
        compiler_params=pltpu.CompilerParams(
            dimension_semantics=("parallel", "arbitrary"),
            vmem_limit_bytes=vmem_limit,
        ),
    )(x, w_fused, b_fused)


if __name__ == "__main__":
    key = jax.random.PRNGKey(0)

    def ref_forward(x, wconv, bconv, wlin, blin):
        Bc, Cc, Hc, Wc = x.shape
        OUTc = wconv.shape[0]
        feat = jnp.einsum("oc,bchw->bo",
                          wconv.reshape(OUTc, Cc).astype(jnp.float32),
                          x.astype(jnp.float32)) / (Hc * Wc) + bconv.astype(jnp.float32)
        return jax.nn.sigmoid(feat @ wlin.astype(jnp.float32).T
                              + blin.astype(jnp.float32))

    # Shapes consistent with the module: input_n_filters=4, out=8.
    B, C_IN, OUT, H, W = 2, 4, 8, 16, 16
    k = jax.random.split(key, 5)
    x = jax.random.normal(k[0], (B, C_IN, H, W), dtype=jnp.float32)
    wconv = jax.random.normal(k[1], (OUT, C_IN, 1, 1), dtype=jnp.float32) * 0.1
    bconv = jax.random.normal(k[2], (OUT,), dtype=jnp.float32) * 0.1
    wlin = jax.random.normal(k[3], (1, OUT), dtype=jnp.float32) * 0.1
    blin = jax.random.normal(k[4], (1,), dtype=jnp.float32) * 0.1

    # Test 1: canonical small shape (single spatial tile, single batch tile).
    out = jax.block_until_ready(instance_counter_forward(x, wconv, bconv, wlin, blin))
    ref = ref_forward(x, wconv, bconv, wlin, blin)
    assert out.shape == (B, 1)
    assert jnp.allclose(out, ref, atol=1e-5), (out, ref)

    # Test 2: multi-step streaming reduction + ragged-tile masking
    # (HW = 400 split into 128-lane tiles -> 4 grid steps, last one masked).
    B2, H2, W2 = 8, 20, 20
    x2 = jax.random.normal(jax.random.PRNGKey(1), (B2, C_IN, H2, W2), dtype=jnp.float32)
    out2 = jax.block_until_ready(
        instance_counter_forward(x2, wconv, bconv, wlin, blin, hw_tile_target=128))
    ref2 = ref_forward(x2, wconv, bconv, wlin, blin)
    assert out2.shape == (B2, 1)
    assert jnp.allclose(out2, ref2, atol=1e-5), (out2, ref2)

    # Test 3: bf16 activations keep native dtype on the HBM->VMEM stream,
    # accumulate in f32 in-kernel.
    B3, H3, W3 = 4, 32, 32
    x3 = jax.random.normal(jax.random.PRNGKey(2), (B3, C_IN, H3, W3),
                           dtype=jnp.float32).astype(jnp.bfloat16)
    out3 = jax.block_until_ready(instance_counter_forward(x3, wconv, bconv, wlin, blin))
    ref3 = ref_forward(x3, wconv, bconv, wlin, blin)
    assert out3.shape == (B3, 1)
    assert jnp.allclose(out3, ref3, atol=1e-4), (out3, ref3)

    print("KERNEL_OK")
</pallas_src>

<mosaic_0001>
module attributes {stable_mosaic.version = 11 : i64} {
  func.func @_instance_counter_kernel(%arg0: i32, %arg1: i32, %arg2: memref<2x4x256xf32, #tpu.memory_space<vmem>>, %arg3: memref<1x4xf32, #tpu.memory_space<vmem>>, %arg4: memref<1x1xf32, #tpu.memory_space<vmem>>, %arg5: memref<2x1xf32, #tpu.memory_space<vmem>>, %arg6: memref<2x4xf32, #tpu.memory_space<vmem>>) attributes {dimension_semantics = [#tpu.dimension_semantics<parallel>, #tpu.dimension_semantics<arbitrary>], iteration_bounds = array<i64: 1, 1>, scalar_prefetch = 0 : i64, scratch_operands = 1 : i64, tpu.core_type = #tpu.core_type<tc>, window_params = [{transform_indices = @transform_0, window_bounds = array<i64: 2, 4, 256>}, {pipeline_mode = #tpu.pipeline_mode<synchronous>, transform_indices = @transform_1, window_bounds = array<i64: 1, 4>}, {pipeline_mode = #tpu.pipeline_mode<synchronous>, transform_indices = @transform_2, window_bounds = array<i64: 1, 1>}, {transform_indices = @transform_3, window_bounds = array<i64: 2, 1>}]} {
    %c0_i32 = arith.constant 0 : i32
    %0 = arith.cmpi eq, %arg1, %c0_i32 : i32
    %1 = arith.extui %0 : i1 to i32
    %c0_i32_0 = arith.constant 0 : i32
    %2 = arith.cmpi ne, %1, %c0_i32_0 : i32
    scf.if %2 {
      %cst_9 = arith.constant 0.000000e+00 : f32
      %11 = vector.broadcast %cst_9 : f32 to vector<2x4xf32>
      %c0_10 = arith.constant 0 : index
      %c0_11 = arith.constant 0 : index
      %12 = vector.load %arg6[%c0_10, %c0_11] : memref<2x4xf32, #tpu.memory_space<vmem>>, vector<2x4xf32>
      tpu.vector_store %arg6[%c0_10, %c0_11], %11 {strides = array<i32>} : memref<2x4xf32, #tpu.memory_space<vmem>>, vector<2x4xf32>,
    } else {
    }
    %c0 = arith.constant 0 : index
    %c0_1 = arith.constant 0 : index
    %c0_2 = arith.constant 0 : index
    %3 = vector.load %arg2[%c0, %c0_1, %c0_2] : memref<2x4x256xf32, #tpu.memory_space<vmem>>, vector<2x4x256xf32>
    %c0_3 = arith.constant 0 : index
    %c0_4 = arith.constant 0 : index
    %4 = vector.load %arg6[%c0_3, %c0_4] : memref<2x4xf32, #tpu.memory_space<vmem>>, vector<2x4xf32>
    %cst = arith.constant dense<0.000000e+00> : vector<2x4xf32>
    %5 = vector.multi_reduction <add>, %3, %cst [2] : vector<2x4x256xf32> to vector<2x4xf32>
    %6 = arith.addf %4, %5 : vector<2x4xf32>
    %c0_5 = arith.constant 0 : index
    %c0_6 = arith.constant 0 : index
    %7 = vector.load %arg6[%c0_5, %c0_6] : memref<2x4xf32, #tpu.memory_space<vmem>>, vector<2x4xf32>
    tpu.vector_store %arg6[%c0_5, %c0_6], %6 {strides = array<i32>} : memref<2x4xf32, #tpu.memory_space<vmem>>, vector<2x4xf32>,
    %c0_i32_7 = arith.constant 0 : i32
    %8 = arith.cmpi eq, %arg1, %c0_i32_7 : i32
    %9 = arith.extui %8 : i1 to i32
    %c0_i32_8 = arith.constant 0 : i32
    %10 = arith.cmpi ne, %9, %c0_i32_8 : i32
    scf.if %10 {
      %c0_9 = arith.constant 0 : index
      %c0_10 = arith.constant 0 : index
      %11 = vector.load %arg6[%c0_9, %c0_10] : memref<2x4xf32, #tpu.memory_space<vmem>>, vector<2x4xf32>
      %c0_11 = arith.constant 0 : index
      %c0_12 = arith.constant 0 : index
      %12 = vector.load %arg3[%c0_11, %c0_12] : memref<1x4xf32, #tpu.memory_space<vmem>>, vector<1x4xf32>
      %13 = vector.broadcast %12 : vector<1x4xf32> to vector<2x4xf32>
      %14 = arith.mulf %11, %13 : vector<2x4xf32>
      %cst_13 = arith.constant dense<0.000000e+00> : vector<2xf32>
      %15 = vector.multi_reduction <add>, %14, %cst_13 [1] : vector<2x4xf32> to vector<2xf32>
      %16 = vector.shape_cast %15 : vector<2xf32> to vector<2x1xf32>
      %c0_14 = arith.constant 0 : index
      %c0_15 = arith.constant 0 : index
      %17 = vector.load %arg4[%c0_14, %c0_15] : memref<1x1xf32, #tpu.memory_space<vmem>>, vector<1x1xf32>
      %18 = vector.broadcast %17 : vector<1x1xf32> to vector<2x1xf32>
      %19 = arith.addf %16, %18 : vector<2x1xf32>
      %20 = arith.negf %19 : vector<2x1xf32>
      %21 = math.exp %20 : vector<2x1xf32>
      %cst_16 = arith.constant 1.000000e+00 : f32
      %22 = vector.broadcast %cst_16 : f32 to vector<2x1xf32>
      %23 = arith.addf %22, %21 : vector<2x1xf32>
      %24 = arith.divf %22, %23 : vector<2x1xf32>
      %c0_17 = arith.constant 0 : index
      %c0_18 = arith.constant 0 : index
      %25 = vector.load %arg5[%c0_17, %c0_18] : memref<2x1xf32, #tpu.memory_space<vmem>>, vector<2x1xf32>
      tpu.vector_store %arg5[%c0_17, %c0_18], %24 {strides = array<i32>} : memref<2x1xf32, #tpu.memory_space<vmem>>, vector<2x1xf32>,
    } else {
    }
    return
  }
  func.func @transform_0(%arg0: i32, %arg1: i32) -> (i32, i32, i32) {
    %c0_i32 = arith.constant 0 : i32
    %c0_i32_0 = arith.constant 0 : i32
    return %arg0, %c0_i32, %arg1 : i32, i32, i32
  }
  func.func @transform_1(%arg0: i32, %arg1: i32) -> (i32, i32) {
    %c0_i32 = arith.constant 0 : i32
    %c0_i32_0 = arith.constant 0 : i32
    %c0_i32_1 = arith.constant 0 : i32
    return %c0_i32, %c0_i32_0 : i32, i32
  }
  func.func @transform_2(%arg0: i32, %arg1: i32) -> (i32, i32) {
    %c0_i32 = arith.constant 0 : i32
    %c0_i32_0 = arith.constant 0 : i32
    %c0_i32_1 = arith.constant 0 : i32
    return %c0_i32, %c0_i32_0 : i32, i32
  }
  func.func @transform_3(%arg0: i32, %arg1: i32) -> (i32, i32) {
    %c0_i32 = arith.constant 0 : i32
    %c0_i32_0 = arith.constant 0 : i32
    return %arg0, %c0_i32 : i32, i32
  }
}

</mosaic_0001>

<llo_original>
// kernel: tpu_custom_call.1
$region0: #{tpu_custom_call.1}
  #allocation0 [shape = 'u32[]', space=smem, size = 0x4, offset = 0x4, fixed_abs, tag = 'smem constant byte address 0x4 - core index']
  #allocation1 [shape = 'u32[144,128]{1,0:T(1,128)}', space=vmem, size = 0x12000, scoped, tag = 'internal scratch']
  #allocation2 [shape = 'f32[2,4]{1,0:T(2,128)}', space=vmem, size = 0x400, scoped, tag = 'scratch operand']
  #allocation3 [shape = 'f32[1,1]{1,0:T(1,128)S(1)}', space=vmem, size = 0x200, scoped, tag = 'scoped memory for tpu_custom_call.1']
  %s0 = inlined_call_operand.hbm [shape: f32[2,4,256], index: 0, kind: input, shape index: {}]
  %s1 = inlined_call_operand.vmem [shape: f32[1,4], index: 1, kind: input, shape index: {}]
  %s2 = inlined_call_operand.<no memory space> [shape: f32[1,1], index: 2, kind: input, shape index: {}]
  %s3 = inlined_call_operand.vmem [shape: f32[2,1], index: 3, kind: output, shape index: {}]
  %s4 = sld [smem:[#allocation0]]
  $region34: #{tpu_custom_call.1} parent=0
    _
  %s6 = ssub.s32 1, %s4
  %s7 = scalar_select 0, %s6, %s4
  %v8 = vstv %s2
  %9 = vst [vmem:[#allocation3] sm:$0x1] %v8
  $region1: #{tpu_custom_call.1} parent=0
    #allocation4 [shape = 'u8[8192]{0}', space=vmem, size = 0x2000, scoped, tag = 'input window, operand 0, single buffered']
    #allocation5 [shape = 's32[1]{0}', space=sflag, size = 0x4, scoped, tag = 'scoped memory for tpu_custom_call.1']
    %10 = vsyncpa [#allocation5], 0
    // Predicated region
    $region2: #{tpu_custom_call.1} parent=1 // pred_check
      _
    $region3: #{tpu_custom_call.1} parent=1 // pred_check_branch
      %12 = sbr.rel (0) target = $region5
    $region4: #{tpu_custom_call.1} parent=1 // pred_region
      %s14 = ssub.s32 256, 256
      %15 = vsyncadd [#allocation5], %s14
      %s16 = sshll.u32 [#allocation4], 4
      %s17 = int_to_ptr.vmem [resolvable:$true] %s16
      %22 = dma.hbm_to_vmem [thread:$0]  %s0, 256, %s17, [#allocation5], 128, 128, 8
    $region5: #{tpu_custom_call.1} parent=1 // pred_fallthru
      _
    // Predicated region
    $region6: #{tpu_custom_call.1} parent=1 // pred_check
      _
    $region7: #{tpu_custom_call.1} parent=1 // pred_check_branch
      %24 = sbr.rel (0) target = $region9
    $region8: #{tpu_custom_call.1} parent=1 // pred_region
      _
    $region9: #{tpu_custom_call.1} parent=1 // pred_fallthru
      _
    // Predicated region
    $region10: #{tpu_custom_call.1} parent=1 // pred_check
      _
    $region11: #{tpu_custom_call.1} parent=1 // pred_check_branch
      %26 = sbr.rel (0) target = $region13
    $region12: #{tpu_custom_call.1} parent=1 // pred_region
      _
    $region13: #{tpu_custom_call.1} parent=1 // pred_fallthru
      _
    // Predicated region
    $region14: #{tpu_custom_call.1} parent=1 // pred_check
      _
    $region15: #{tpu_custom_call.1} parent=1 // pred_check_branch
      %28 = sbr.rel (0) target = $region17
    $region16: #{tpu_custom_call.1} parent=1 // pred_region
      %29 = dma.done [#allocation5], 256
    $region17: #{tpu_custom_call.1} parent=1 // pred_fallthru
      _
    %p30 = scmp.eq.s32.totalorder 0, 0
    // Predicated region
    $region18: #{tpu_custom_call.1} parent=1 // pred_check
      %p31 = pneg %p30
    $region19: #{tpu_custom_call.1} parent=1 // pred_check_branch
      %33 = sbr.rel (%p31) target = $region21
    $region20: #{tpu_custom_call.1} parent=1 // pred_region
      %vm34 = vcmask 25600
      %35 = vst.msk [vmem:[#allocation2] sm:$0x3] %vm34, 0.0
    $region21: #{tpu_custom_call.1} parent=1 // pred_fallthru
      _
    %v36 = vld [vmem:[#allocation4] sm:$0xff]
    %v37 = vld [vmem:[#allocation4 + $0x8] sm:$0xff]
    %v38 = vld [vmem:[#allocation2] sm:$0x3]
    %v41 = vcombine.high %v36, %v36
    %v42 = vcombine.high %v37, %v37
    %vm45 = vcmask 1043456
    %v46 = vsel %vm45, %v36, 0.0
    %v47 = vsel %vm45, %v41, 0.0
    %v48 = vadd.f32 %v46, %v47
    %49 = vadd.xlane.f32.xlu0 %v48
    %v50 = vpop.xlane.xlu0 %49
    %v51 = vsel %vm45, %v37, 0.0
    %v52 = vsel %vm45, %v42, 0.0
    %v53 = vadd.f32 %v51, %v52
    %54 = vadd.xlane.f32.xlu0 %v53
    %v55 = vpop.xlane.xlu0 %54
    %v58 = vlaneseq
    %v59 = vand.u32 %v58, 127
    %v60 = vlaneseq
    %v61 = vshrl.u32 %v60, 7
    %v62 = vsub.s32 %v59, %v61
    %v63 = vrot.slane %v50, %v62
    %v64 = vlaneseq
    %v65 = vshrl.u32 %v64, 7
    %v66 = vsub.s32 %v59, %v65
    %v67 = vrot.slane %v55, %v66
    %vm68 = vcmask 1041409
    %v69 = vsel %vm68, %v67, %v63
    %v71 = vadd.f32 %v38, %v69
    %vm72 = vcmask 25600
    %73 = vst.msk [vmem:[#allocation2] sm:$0x3] %vm72, %v71
    // Predicated region
    $region22: #{tpu_custom_call.1} parent=1 // pred_check
      %p74 = pneg %p30
    $region23: #{tpu_custom_call.1} parent=1 // pred_check_branch
      %76 = sbr.rel (%p74) target = $region25
    $region24: #{tpu_custom_call.1} parent=1 // pred_region
      %v77 = vld [vmem:[#allocation2] sm:$0x3]
      %v78 = vld [vmem:[%s1] sm:$0x1]
      %v80 = vlaneseq
      %v81 = vshrl.u32 %v80, 7
      %v82 = vsub.s32 0, %v81
      %v83 = vrot.slane %v78, %v82
      %v85 = vmul.f32 %v77, %v83
      %v86 = vsel %vm72, %v85, 0.0
      %87 = vadd.xlane.f32.xlu0 %v86
      %v88 = vpop.xlane.xlu0 %87
      %v89 = vld [vmem:[#allocation3] sm:$0x1]
      %v91 = vlaneseq
      %v92 = vshrl.u32 %v91, 7
      %v93 = vsub.s32 0, %v92
      %v94 = vrot.slane %v89, %v93
      %v96 = vadd.f32 %v88, %v94
      %v97 = vxor.u32 %v96, 2147483648
      %v98 = vmul.f32 %v97, 1.442695
      %v99 = vpow.pop %v98
      %v100 = vadd.f32 %v99, 1.0
      %v101 = vrcp.pop %v100
      %v102 = vmul.f32 1.0, %v101
      %vm103 = vcmask 1024
      %104 = vst.msk [vmem:[%s3] sm:$0x3] %vm103, %v102
    $region25: #{tpu_custom_call.1} parent=1 // pred_fallthru
      _
    // Predicated region
    $region26: #{tpu_custom_call.1} parent=1 // pred_check
      _
    $region27: #{tpu_custom_call.1} parent=1 // pred_check_branch
      %106 = sbr.rel (0) target = $region29
    $region28: #{tpu_custom_call.1} parent=1 // pred_region
      _
    $region29: #{tpu_custom_call.1} parent=1 // pred_fallthru
      _
    // Predicated region
    $region30: #{tpu_custom_call.1} parent=1 // pred_check
      _
    $region31: #{tpu_custom_call.1} parent=1 // pred_check_branch
      %108 = sbr.rel (0) target = $region33
    $region32: #{tpu_custom_call.1} parent=1 // pred_region
      _
    $region33: #{tpu_custom_call.1} parent=1 // pred_fallthru
      _
    %109 = vsyncpa [#allocation5], 1

</llo_original>
